<compile_context>
chip_gen: v6e
topology: v6e:2x2x1
jax: 0.10.0
libtpu: 0.0.40
codegen_flags: <defaults>
</compile_context>

<pallas_src>
import math

import jax
import jax.numpy as jnp
from jax.experimental import pallas as pl
from jax.experimental.pallas import tpu as pltpu

RELU_LEAK = 0.1
CLAMP_LO, CLAMP_HI = -5.0, 5.0
HIDDEN = 100        # logical hidden width of the torch module
HIDDEN_PAD = 128    # lane-aligned hidden width used by the kernel


def _round_up(x, m):
    return (x + m - 1) // m * m


# ----------------------------------------------------------------------------
# Deterministic orthogonal init (matches torch.nn.init.orthogonal_ semantics).
# ----------------------------------------------------------------------------
def orthogonal_init(key, out_features, in_features, gain):
    rows, cols = out_features, in_features
    a = jax.random.normal(key, (rows, cols), dtype=jnp.float32)
    transpose = rows < cols
    if transpose:
        a = a.T
    q, r = jnp.linalg.qr(a)
    d = jnp.sign(jnp.diagonal(r))       # sign correction -> unique decomposition
    q = q * d[None, :]
    if transpose:
        q = q.T
    return gain * q                     # [out_features, in_features] (PyTorch convention)


# ----------------------------------------------------------------------------
# Pallas kernel: full discriminator MLP forward for one batch tile.
# ----------------------------------------------------------------------------
def _discriminator_kernel(a_ref, b_ref, w1a_ref, w1b_ref, w2_ref, p_ref, out_ref):
    cd = w2_ref.dtype                        # MXU operand dtype (f32 or bf16)

    # Elementwise work stays in f32 (v5e VPU has no bf16 path).
    a = jnp.clip(a_ref[...], CLAMP_LO, CLAMP_HI)   # obs clamp (input_a only)
    b = b_ref[...]

    # Packed parameters (all VMEM-resident across the grid).
    b1 = p_ref[0:1, :]                       # [1, 128] f32
    b2 = p_ref[1:2, :]                       # [1, 128] f32
    w3_row = p_ref[2:3, :]                   # [1, 128] f32 (head weights as a row)
    b3 = p_ref[3:4, 0:1]                     # [1, 1]   f32

    # fc_block_1: concat folded into two dots  [a, b] @ W1 == a@W1a + b@W1b
    h = (jnp.dot(a.astype(cd), w1a_ref[...], preferred_element_type=jnp.float32)
         + jnp.dot(b.astype(cd), w1b_ref[...], preferred_element_type=jnp.float32)
         + b1)
    h = jnp.where(h >= 0, h, RELU_LEAK * h)

    # fc_block_2
    h = jnp.dot(h.astype(cd), w2_ref[...], preferred_element_type=jnp.float32) + b2
    h = jnp.where(h >= 0, h, RELU_LEAK * h)

    # d_head: N=1 matmul replaced by VPU multiply + lane (XLU) reduction.
    score = jnp.sum(h * w3_row, axis=-1, keepdims=True) + b3
    out_ref[...] = score.astype(out_ref.dtype)


# ----------------------------------------------------------------------------
# Wrapper: batch-tiled pallas_call with weight-resident BlockSpecs.
# ----------------------------------------------------------------------------
def discriminator_forward(input_a, input_b, params, *, block_rows=2048):
    w1a, w1b, w2, pslab = params["w1a"], params["w1b"], params["w2"], params["pslab"]
    B = input_a.shape[0]
    ob_dim = input_a.shape[1]
    ac_dim = input_b.shape[1]
    H = w2.shape[0]
    in_dim = ob_dim + ac_dim

    # Batch tiling: pad B to a multiple of the tile so every block is (tb, .).
    tb = min(block_rows, _round_up(max(B, 1), 8))
    Bp = _round_up(B, tb)
    if Bp != B:
        pad = Bp - B
        input_a = jnp.pad(input_a, ((0, pad), (0, 0)))
        input_b = jnp.pad(input_b, ((0, pad), (0, 0)))

    grid = (Bp // tb,)

    cost = pl.CostEstimate(
        flops=2 * Bp * (in_dim * H + H * H + H),
        transcendentals=0,
        bytes_accessed=int(input_a.size * input_a.dtype.itemsize
                           + input_b.size * input_b.dtype.itemsize
                           + Bp * 4
                           + w1a.size * w1a.dtype.itemsize
                           + w1b.size * w1b.dtype.itemsize
                           + w2.size * w2.dtype.itemsize
                           + pslab.size * pslab.dtype.itemsize),
    )

    out = pl.pallas_call(
        _discriminator_kernel,
        out_shape=jax.ShapeDtypeStruct((Bp, 1), jnp.float32),
        grid=grid,
        in_specs=[
            pl.BlockSpec((tb, ob_dim), lambda i: (i, 0)),   # activation tile a (streamed)
            pl.BlockSpec((tb, ac_dim), lambda i: (i, 0)),   # activation tile b (streamed)
            pl.BlockSpec((ob_dim, H), lambda i: (0, 0)),    # W1a (resident)
            pl.BlockSpec((ac_dim, H), lambda i: (0, 0)),    # W1b (resident)
            pl.BlockSpec((H, H), lambda i: (0, 0)),         # W2  (resident)
            pl.BlockSpec((8, H), lambda i: (0, 0)),         # bias/head slab (resident)
        ],
        out_specs=pl.BlockSpec((tb, 1), lambda i: (i, 0)),
        compiler_params=pltpu.CompilerParams(
            dimension_semantics=("parallel",)),             # shards across TCs on v7x
        cost_estimate=cost,
    )(input_a, input_b, w1a, w1b, w2, pslab)
    return out[:B]


# ----------------------------------------------------------------------------
# Parameter construction / packing.
# ----------------------------------------------------------------------------
def make_raw_params(key, ob_dim, ac_dim, hidden=HIDDEN):
    """Raw (unpadded) params in x@W layout, mirroring the torch module init."""
    in_dim = ob_dim + ac_dim
    k1, k2, k3 = jax.random.split(key, 3)
    fc_gain = math.sqrt(2.0) / math.sqrt(1.0 + RELU_LEAK ** 2)
    head_gain = 0.01
    w1_pt = orthogonal_init(k1, hidden, in_dim, fc_gain)    # [100, in_dim]
    w2_pt = orthogonal_init(k2, hidden, hidden, fc_gain)    # [100, 100]
    w3_pt = orthogonal_init(k3, 1, hidden, head_gain)       # [1, 100]
    return {
        "w1": w1_pt.T, "b1": jnp.zeros((hidden,), jnp.float32),
        "w2": w2_pt.T, "b2": jnp.zeros((hidden,), jnp.float32),
        "w3": w3_pt.T, "b3": jnp.zeros((), jnp.float32),
    }


def pack_params(raw, ob_dim, ac_dim, *, compute_dtype=jnp.float32):
    """Pad hidden 100->128, split W1, pack biases + head row into one [8,128] slab."""
    hidden, H = HIDDEN, HIDDEN_PAD
    w1 = jnp.zeros((ob_dim + ac_dim, H), jnp.float32).at[:, :hidden].set(raw["w1"])
    w2 = jnp.zeros((H, H), jnp.float32).at[:hidden, :hidden].set(raw["w2"])
    pslab = (jnp.zeros((8, H), jnp.float32)
             .at[0, :hidden].set(raw["b1"])
             .at[1, :hidden].set(raw["b2"])
             .at[2, :hidden].set(raw["w3"][:, 0])
             .at[3, 0].set(raw["b3"]))
    return {
        "w1a": w1[:ob_dim].astype(compute_dtype),   # MXU operands may be bf16
        "w1b": w1[ob_dim:].astype(compute_dtype),
        "w2": w2.astype(compute_dtype),
        "pslab": pslab,                              # biases / head row kept f32
        "ob_dim": ob_dim,
    }


# ----------------------------------------------------------------------------
# Pure-JAX reference.
# ----------------------------------------------------------------------------
def discriminator_ref(input_a, input_b, raw):
    a = jnp.clip(input_a, CLAMP_LO, CLAMP_HI)
    x = jnp.concatenate([a, input_b], axis=-1)
    h = x @ raw["w1"] + raw["b1"]
    h = jnp.where(h >= 0, h, RELU_LEAK * h)
    h = h @ raw["w2"] + raw["b2"]
    h = jnp.where(h >= 0, h, RELU_LEAK * h)
    return h @ raw["w3"] + raw["b3"]


if __name__ == "__main__":
    B, OB_DIM, AC_DIM = 50, 16, 8          # B not a tile multiple -> exercises padding

    key = jax.random.PRNGKey(0)
    k_params, k_a, k_b = jax.random.split(key, 3)

    raw = make_raw_params(k_params, OB_DIM, AC_DIM)

    # observations scaled up a bit so the clamp actually clips something
    input_a = 6.0 * jax.random.normal(k_a, (B, OB_DIM), dtype=jnp.float32)
    input_b = jax.random.normal(k_b, (B, AC_DIM), dtype=jnp.float32)

    ref = discriminator_ref(input_a, input_b, raw)

    # f32 MXU operands — tight check (small block size to exercise the grid).
    params_f32 = pack_params(raw, OB_DIM, AC_DIM, compute_dtype=jnp.float32)
    out_f32 = discriminator_forward(input_a, input_b, params_f32, block_rows=32)
    out_f32 = jax.block_until_ready(out_f32)
    assert out_f32.shape == (B, 1)
    assert jnp.allclose(out_f32, ref, atol=1e-3, rtol=1e-3), (out_f32, ref)

    # bf16 MXU operands (v6e/v7x roofline configuration) — loose check.
    params_bf16 = pack_params(raw, OB_DIM, AC_DIM, compute_dtype=jnp.bfloat16)
    out_bf16 = discriminator_forward(input_a, input_b, params_bf16, block_rows=32)
    out_bf16 = jax.block_until_ready(out_bf16)
    assert out_bf16.shape == (B, 1)
    assert jnp.allclose(out_bf16, ref, atol=5e-2, rtol=5e-2), (out_bf16, ref)

    print("KERNEL_OK")
</pallas_src>

<mosaic_0001>
module attributes {stable_mosaic.version = 11 : i64} {
  func.func @_discriminator_kernel(%arg0: i32, %arg1: memref<32x16xf32, #tpu.memory_space<vmem>>, %arg2: memref<32x8xf32, #tpu.memory_space<vmem>>, %arg3: memref<16x128xf32, #tpu.memory_space<vmem>>, %arg4: memref<8x128xf32, #tpu.memory_space<vmem>>, %arg5: memref<128x128xf32, #tpu.memory_space<vmem>>, %arg6: memref<8x128xf32, #tpu.memory_space<vmem>>, %arg7: memref<32x1xf32, #tpu.memory_space<vmem>>) attributes {dimension_semantics = [#tpu.dimension_semantics<parallel>], iteration_bounds = array<i64: 2>, scalar_prefetch = 0 : i64, scratch_operands = 0 : i64, tpu.core_type = #tpu.core_type<tc>, window_params = [{transform_indices = @transform_0, window_bounds = array<i64: 32, 16>}, {transform_indices = @transform_1, window_bounds = array<i64: 32, 8>}, {pipeline_mode = #tpu.pipeline_mode<synchronous>, transform_indices = @transform_2, window_bounds = array<i64: 16, 128>}, {pipeline_mode = #tpu.pipeline_mode<synchronous>, transform_indices = @transform_3, window_bounds = array<i64: 8, 128>}, {pipeline_mode = #tpu.pipeline_mode<synchronous>, transform_indices = @transform_4, window_bounds = array<i64: 128, 128>}, {pipeline_mode = #tpu.pipeline_mode<synchronous>, transform_indices = @transform_5, window_bounds = array<i64: 8, 128>}, {transform_indices = @transform_6, window_bounds = array<i64: 32, 1>}]} {
    %c0 = arith.constant 0 : index
    %c0_0 = arith.constant 0 : index
    %0 = vector.load %arg1[%c0, %c0_0] : memref<32x16xf32, #tpu.memory_space<vmem>>, vector<32x16xf32>
    %cst = arith.constant -5.000000e+00 : f32
    %cst_1 = arith.constant 5.000000e+00 : f32
    %1 = vector.broadcast %cst : f32 to vector<32x16xf32>
    %2 = arith.maximumf %1, %0 : vector<32x16xf32>
    %3 = vector.broadcast %cst_1 : f32 to vector<32x16xf32>
    %4 = arith.minimumf %3, %2 : vector<32x16xf32>
    %c0_2 = arith.constant 0 : index
    %c0_3 = arith.constant 0 : index
    %5 = vector.load %arg2[%c0_2, %c0_3] : memref<32x8xf32, #tpu.memory_space<vmem>>, vector<32x8xf32>
    %c0_4 = arith.constant 0 : index
    %c0_5 = arith.constant 0 : index
    %6 = vector.load %arg6[%c0_4, %c0_5] : memref<8x128xf32, #tpu.memory_space<vmem>>, vector<1x128xf32>
    %c1 = arith.constant 1 : index
    %c0_6 = arith.constant 0 : index
    %7 = vector.load %arg6[%c1, %c0_6] : memref<8x128xf32, #tpu.memory_space<vmem>>, vector<1x128xf32>
    %c2 = arith.constant 2 : index
    %c0_7 = arith.constant 0 : index
    %8 = vector.load %arg6[%c2, %c0_7] : memref<8x128xf32, #tpu.memory_space<vmem>>, vector<1x128xf32>
    %c3 = arith.constant 3 : index
    %c0_8 = arith.constant 0 : index
    %9 = vector.load %arg6[%c3, %c0_8] : memref<8x128xf32, #tpu.memory_space<vmem>>, vector<1x1xf32>
    %c0_9 = arith.constant 0 : index
    %c0_10 = arith.constant 0 : index
    %10 = vector.load %arg3[%c0_9, %c0_10] : memref<16x128xf32, #tpu.memory_space<vmem>>, vector<16x128xf32>
    %cst_11 = arith.constant dense<0.000000e+00> : vector<32x128xf32>
    %11 = tpu.matmul %4, %10, %cst_11 {dimension_numbers = #tpu.dot_dimension_numbers<[1], [0], [0], [1], [0, 0, 1, 1], [], []>} : vector<32x16xf32>, vector<16x128xf32>, vector<32x128xf32> -> vector<32x128xf32>
    %c0_12 = arith.constant 0 : index
    %c0_13 = arith.constant 0 : index
    %12 = vector.load %arg4[%c0_12, %c0_13] : memref<8x128xf32, #tpu.memory_space<vmem>>, vector<8x128xf32>
    %cst_14 = arith.constant dense<0.000000e+00> : vector<32x128xf32>
    %13 = tpu.matmul %5, %12, %cst_14 {dimension_numbers = #tpu.dot_dimension_numbers<[1], [0], [0], [1], [0, 0, 1, 1], [], []>} : vector<32x8xf32>, vector<8x128xf32>, vector<32x128xf32> -> vector<32x128xf32>
    %14 = arith.addf %11, %13 : vector<32x128xf32>
    %15 = vector.broadcast %6 : vector<1x128xf32> to vector<32x128xf32>
    %16 = arith.addf %14, %15 : vector<32x128xf32>
    %cst_15 = arith.constant 0.000000e+00 : f32
    %17 = vector.broadcast %cst_15 : f32 to vector<32x128xf32>
    %18 = arith.cmpf oge, %16, %17 : vector<32x128xf32>
    %cst_16 = arith.constant 1.000000e-01 : f32
    %19 = vector.broadcast %cst_16 : f32 to vector<32x128xf32>
    %20 = arith.mulf %19, %16 : vector<32x128xf32>
    %21 = arith.select %18, %16, %20 : vector<32x128xi1>, vector<32x128xf32>
    %c0_17 = arith.constant 0 : index
    %c0_18 = arith.constant 0 : index
    %22 = vector.load %arg5[%c0_17, %c0_18] : memref<128x128xf32, #tpu.memory_space<vmem>>, vector<128x128xf32>
    %cst_19 = arith.constant dense<0.000000e+00> : vector<32x128xf32>
    %23 = tpu.matmul %21, %22, %cst_19 {dimension_numbers = #tpu.dot_dimension_numbers<[1], [0], [0], [1], [0, 0, 1, 1], [], []>} : vector<32x128xf32>, vector<128x128xf32>, vector<32x128xf32> -> vector<32x128xf32>
    %24 = vector.broadcast %7 : vector<1x128xf32> to vector<32x128xf32>
    %25 = arith.addf %23, %24 : vector<32x128xf32>
    %cst_20 = arith.constant 0.000000e+00 : f32
    %26 = vector.broadcast %cst_20 : f32 to vector<32x128xf32>
    %27 = arith.cmpf oge, %25, %26 : vector<32x128xf32>
    %cst_21 = arith.constant 1.000000e-01 : f32
    %28 = vector.broadcast %cst_21 : f32 to vector<32x128xf32>
    %29 = arith.mulf %28, %25 : vector<32x128xf32>
    %30 = arith.select %27, %25, %29 : vector<32x128xi1>, vector<32x128xf32>
    %31 = vector.broadcast %8 : vector<1x128xf32> to vector<32x128xf32>
    %32 = arith.mulf %30, %31 : vector<32x128xf32>
    %cst_22 = arith.constant dense<0.000000e+00> : vector<32xf32>
    %33 = vector.multi_reduction <add>, %32, %cst_22 [1] : vector<32x128xf32> to vector<32xf32>
    %34 = vector.shape_cast %33 : vector<32xf32> to vector<32x1xf32>
    %35 = vector.broadcast %9 : vector<1x1xf32> to vector<32x1xf32>
    %36 = arith.addf %34, %35 : vector<32x1xf32>
    %c0_23 = arith.constant 0 : index
    %c0_24 = arith.constant 0 : index
    %37 = vector.load %arg7[%c0_23, %c0_24] : memref<32x1xf32, #tpu.memory_space<vmem>>, vector<32x1xf32>
    tpu.vector_store %arg7[%c0_23, %c0_24], %36 {strides = array<i32>} : memref<32x1xf32, #tpu.memory_space<vmem>>, vector<32x1xf32>,
    return
  }
  func.func @transform_0(%arg0: i32) -> (i32, i32) {
    %c0_i32 = arith.constant 0 : i32
    %c0_i32_0 = arith.constant 0 : i32
    return %arg0, %c0_i32 : i32, i32
  }
  func.func @transform_1(%arg0: i32) -> (i32, i32) {
    %c0_i32 = arith.constant 0 : i32
    %c0_i32_0 = arith.constant 0 : i32
    return %arg0, %c0_i32 : i32, i32
  }
  func.func @transform_2(%arg0: i32) -> (i32, i32) {
    %c0_i32 = arith.constant 0 : i32
    %c0_i32_0 = arith.constant 0 : i32
    %c0_i32_1 = arith.constant 0 : i32
    return %c0_i32, %c0_i32_0 : i32, i32
  }
  func.func @transform_3(%arg0: i32) -> (i32, i32) {
    %c0_i32 = arith.constant 0 : i32
    %c0_i32_0 = arith.constant 0 : i32
    %c0_i32_1 = arith.constant 0 : i32
    return %c0_i32, %c0_i32_0 : i32, i32
  }
  func.func @transform_4(%arg0: i32) -> (i32, i32) {
    %c0_i32 = arith.constant 0 : i32
    %c0_i32_0 = arith.constant 0 : i32
    %c0_i32_1 = arith.constant 0 : i32
    return %c0_i32, %c0_i32_0 : i32, i32
  }
  func.func @transform_5(%arg0: i32) -> (i32, i32) {
    %c0_i32 = arith.constant 0 : i32
    %c0_i32_0 = arith.constant 0 : i32
    %c0_i32_1 = arith.constant 0 : i32
    return %c0_i32, %c0_i32_0 : i32, i32
  }
  func.func @transform_6(%arg0: i32) -> (i32, i32) {
    %c0_i32 = arith.constant 0 : i32
    %c0_i32_0 = arith.constant 0 : i32
    return %arg0, %c0_i32 : i32, i32
  }
}

</mosaic_0001>

<llo_original>
// kernel: tpu_custom_call.1
$region0: #{tpu_custom_call.1}
  #allocation0 [shape = 'u32[]', space=smem, size = 0x4, offset = 0x4, fixed_abs, tag = 'smem constant byte address 0x4 - core index']
  #allocation1 [shape = 'u32[144,128]{1,0:T(1,128)}', space=vmem, size = 0x12000, scoped, tag = 'internal scratch']
  %s0 = inlined_call_operand.vmem [shape: f32[64,16], index: 0, kind: input, shape index: {}]
  %s1 = inlined_call_operand.vmem [shape: f32[64,8], index: 1, kind: input, shape index: {}]
  %s2 = inlined_call_operand.vmem [shape: f32[16,128], index: 2, kind: input, shape index: {}]
  %s3 = inlined_call_operand.vmem [shape: f32[8,128], index: 3, kind: input, shape index: {}]
  %s4 = inlined_call_operand.vmem [shape: f32[128,128], index: 4, kind: input, shape index: {}]
  %s5 = inlined_call_operand.vmem [shape: f32[8,128], index: 5, kind: input, shape index: {}]
  %s6 = inlined_call_operand.vmem [shape: f32[64,1], index: 6, kind: output, shape index: {}]
  %s7 = sld [smem:[#allocation0]]
  $region57: #{tpu_custom_call.1} parent=0
    _
  %s9 = ssub.s32 1, %s7
  %s10 = scalar_select 0, %s9, %s7
  loop: start=0, step=1, limit=4
  $region2: #{tpu_custom_call.1} parent=0 // loop_pre_header
    _
  $region3: #{tpu_custom_call.1} parent=0 // loop_header
    %s12 = sphi 0, %s16
    %p13 = scmp.ge.s32.totalorder %s12, 4
    %s22 = sphi 0, %s24
    %s25 = sphi 0, %s22
    %s26 = sphi 0, %s25
    %s42 = sphi 0, %s26
    %s48 = sphi 0, %s50
    %s51 = sphi 0, %s48
    %s52 = sphi 0, %s51
    %s68 = sphi 0, %s52
    %s72 = sphi 0, %s72
    %s74 = sphi 0, %s72
    %s75 = sphi 0, %s74
    %s89 = sphi 0, %s75
    %s93 = sphi 0, %s93
    %s95 = sphi 0, %s93
    %s96 = sphi 0, %s95
    %s110 = sphi 0, %s96
    %s114 = sphi 0, %s114
    %s116 = sphi 0, %s114
    %s117 = sphi 0, %s116
    %s131 = sphi 0, %s117
    %s135 = sphi 0, %s135
    %s137 = sphi 0, %s135
    %s138 = sphi 0, %s137
    %s152 = sphi 0, %s138
    %s158 = sphi 0, %s160
    %s161 = sphi 0, %s158
    %s162 = sphi 0, %s161
    %s178 = sphi 0, %s162
  $region4: #{tpu_custom_call.1} parent=0 // loop_header_branch
    %15 = sbr.rel (%p13) target = $region8
  $region5: #{tpu_custom_call.1} parent=0 // loop_body
    %s17 = ssub.s32 %s12, 1
    %s18 = ssub.s32 %s12, 2
    %s19 = sadd.s32 %s12, 1
    %s20 = ssub.s32 %s12, %s19
    %p21 = scmp.eq.s32.totalorder %s20, 0
    %s23 = sadd.s32 %s22, 1
    %s24 = scalar_select %p21, %s22, %s23
    %p27 = pneg %p21
    %p28 = scmp.eq.s32.totalorder %s12, 1
    %p29 = por %p27, %p28
    %p30 = scmp.ne.s32.totalorder %s22, %s25
    %p31 = scmp.eq.s32.totalorder %s12, 0
    %p32 = por %p30, %p31
    %p33 = scmp.ne.s32.totalorder %s22, %s25
    %p34 = scmp.eq.s32.totalorder %s17, 1
    %p35 = por %p33, %p34
    %p36 = scmp.ne.s32.totalorder %s25, %s26
    %p37 = scmp.eq.s32.totalorder %s17, 0
    %p38 = por %p36, %p37
    %p39 = scmp.ne.s32.totalorder %s25, %s26
    %p40 = scmp.eq.s32.totalorder %s18, 1
    %p41 = por %p39, %p40
    %p43 = scmp.ne.s32.totalorder %s26, %s42
    %p44 = scmp.eq.s32.totalorder %s18, 0
    %p45 = por %p43, %p44
    %s46 = ssub.s32 %s12, %s19
    %p47 = scmp.eq.s32.totalorder %s46, 0
    %s49 = sadd.s32 %s48, 1
    %s50 = scalar_select %p47, %s48, %s49
    %p53 = pneg %p47
    %p54 = scmp.eq.s32.totalorder %s12, 1
    %p55 = por %p53, %p54
    %p56 = scmp.ne.s32.totalorder %s48, %s51
    %p57 = scmp.eq.s32.totalorder %s12, 0
    %p58 = por %p56, %p57
    %p59 = scmp.ne.s32.totalorder %s48, %s51
    %p60 = scmp.eq.s32.totalorder %s17, 1
    %p61 = por %p59, %p60
    %p62 = scmp.ne.s32.totalorder %s51, %s52
    %p63 = scmp.eq.s32.totalorder %s17, 0
    %p64 = por %p62, %p63
    %p65 = scmp.ne.s32.totalorder %s51, %s52
    %p66 = scmp.eq.s32.totalorder %s18, 1
    %p67 = por %p65, %p66
    %p69 = scmp.ne.s32.totalorder %s52, %s68
    %p70 = scmp.eq.s32.totalorder %s18, 0
    %p71 = por %p69, %p70
    %s73 = sadd.s32 %s72, 1
    %p76 = scmp.eq.s32.totalorder %s12, 1
    %p77 = scmp.ne.s32.totalorder %s72, %s74
    %p78 = scmp.eq.s32.totalorder %s12, 0
    %p79 = por %p77, %p78
    %p80 = scmp.ne.s32.totalorder %s72, %s74
    %p81 = scmp.eq.s32.totalorder %s17, 1
    %p82 = por %p80, %p81
    %p83 = scmp.ne.s32.totalorder %s74, %s75
    %p84 = scmp.eq.s32.totalorder %s17, 0
    %p85 = por %p83, %p84
    %p86 = scmp.ne.s32.totalorder %s74, %s75
    %p87 = scmp.eq.s32.totalorder %s18, 1
    %p88 = por %p86, %p87
    %p90 = scmp.ne.s32.totalorder %s75, %s89
    %p91 = scmp.eq.s32.totalorder %s18, 0
    %p92 = por %p90, %p91
    %s94 = sadd.s32 %s93, 1
    %p97 = scmp.eq.s32.totalorder %s12, 1
    %p98 = scmp.ne.s32.totalorder %s93, %s95
    %p99 = scmp.eq.s32.totalorder %s12, 0
    %p100 = por %p98, %p99
    %p101 = scmp.ne.s32.totalorder %s93, %s95
    %p102 = scmp.eq.s32.totalorder %s17, 1
    %p103 = por %p101, %p102
    %p104 = scmp.ne.s32.totalorder %s95, %s96
    %p105 = scmp.eq.s32.totalorder %s17, 0
    %p106 = por %p104, %p105
    %p107 = scmp.ne.s32.totalorder %s95, %s96
    %p108 = scmp.eq.s32.totalorder %s18, 1
    %p109 = por %p107, %p108
    %p111 = scmp.ne.s32.totalorder %s96, %s110
    %p112 = scmp.eq.s32.totalorder %s18, 0
    %p113 = por %p111, %p112
    %s115 = sadd.s32 %s114, 1
    %p118 = scmp.eq.s32.totalorder %s12, 1
    %p119 = scmp.ne.s32.totalorder %s114, %s116
    %p120 = scmp.eq.s32.totalorder %s12, 0
    %p121 = por %p119, %p120
    %p122 = scmp.ne.s32.totalorder %s114, %s116
    %p123 = scmp.eq.s32.totalorder %s17, 1
    %p124 = por %p122, %p123
    %p125 = scmp.ne.s32.totalorder %s116, %s117
    %p126 = scmp.eq.s32.totalorder %s17, 0
    %p127 = por %p125, %p126
    %p128 = scmp.ne.s32.totalorder %s116, %s117
    %p129 = scmp.eq.s32.totalorder %s18, 1
    %p130 = por %p128, %p129
    %p132 = scmp.ne.s32.totalorder %s117, %s131
    %p133 = scmp.eq.s32.totalorder %s18, 0
    %p134 = por %p132, %p133
    %s136 = sadd.s32 %s135, 1
    %p139 = scmp.eq.s32.totalorder %s12, 1
    %p140 = scmp.ne.s32.totalorder %s135, %s137
    %p141 = scmp.eq.s32.totalorder %s12, 0
    %p142 = por %p140, %p141
    %p143 = scmp.ne.s32.totalorder %s135, %s137
    %p144 = scmp.eq.s32.totalorder %s17, 1
    %p145 = por %p143, %p144
    %p146 = scmp.ne.s32.totalorder %s137, %s138
    %p147 = scmp.eq.s32.totalorder %s17, 0
    %p148 = por %p146, %p147
    %p149 = scmp.ne.s32.totalorder %s137, %s138
    %p150 = scmp.eq.s32.totalorder %s18, 1
    %p151 = por %p149, %p150
    %p153 = scmp.ne.s32.totalorder %s138, %s152
    %p154 = scmp.eq.s32.totalorder %s18, 0
    %p155 = por %p153, %p154
    %s156 = ssub.s32 %s12, %s19
    %p157 = scmp.eq.s32.totalorder %s156, 0
    %s159 = sadd.s32 %s158, 1
    %s160 = scalar_select %p157, %s158, %s159
    %p163 = pneg %p157
    %p164 = scmp.eq.s32.totalorder %s12, 1
    %p165 = por %p163, %p164
    %p166 = scmp.ne.s32.totalorder %s158, %s161
    %p167 = scmp.eq.s32.totalorder %s12, 0
    %p168 = por %p166, %p167
    %p169 = scmp.ne.s32.totalorder %s158, %s161
    %p170 = scmp.eq.s32.totalorder %s17, 1
    %p171 = por %p169, %p170
    %p172 = scmp.ne.s32.totalorder %s161, %s162
    %p173 = scmp.eq.s32.totalorder %s17, 0
    %p174 = por %p172, %p173
    %p175 = scmp.ne.s32.totalorder %s161, %s162
    %p176 = scmp.eq.s32.totalorder %s18, 1
    %p177 = por %p175, %p176
    %p179 = scmp.ne.s32.totalorder %s162, %s178
    %p180 = scmp.eq.s32.totalorder %s18, 0
    %p181 = por %p179, %p180
    %p182 = scmp.le.s32.totalorder 1, %s12
    %p183 = scmp.lt.s32.totalorder %s12, 3
    %p184 = pnand %p182, %p183
    %p185 = pneg %p184
    // Predicated region
    $region9: #{tpu_custom_call.1} parent=5 // pred_check
      _
    $region10: #{tpu_custom_call.1} parent=5 // pred_check_branch
      %187 = sbr.rel (%p184) target = $region12
    $region11: #{tpu_custom_call.1} parent=5 // pred_region
      %s188 = ssub.s32 %s12, 1
      // Predicated region
      $region13: #{tpu_custom_call.1} parent=11 // pred_check
        %p189 = pneg %p85
      $region14: #{tpu_custom_call.1} parent=11 // pred_check_branch
        %191 = sbr.rel (%p189) target = $region16
      $region15: #{tpu_custom_call.1} parent=11 // pred_region
        _
      $region16: #{tpu_custom_call.1} parent=11 // pred_fallthru
        _
      // Predicated region
      $region17: #{tpu_custom_call.1} parent=11 // pred_check
        %p192 = pneg %p106
      $region18: #{tpu_custom_call.1} parent=11 // pred_check_branch
        %194 = sbr.rel (%p192) target = $region20
      $region19: #{tpu_custom_call.1} parent=11 // pred_region
        _
      $region20: #{tpu_custom_call.1} parent=11 // pred_fallthru
        _
      // Predicated region
      $region21: #{tpu_custom_call.1} parent=11 // pred_check
        %p195 = pneg %p127
      $region22: #{tpu_custom_call.1} parent=11 // pred_check_branch
        %197 = sbr.rel (%p195) target = $region24
      $region23: #{tpu_custom_call.1} parent=11 // pred_region
        _
      $region24: #{tpu_custom_call.1} parent=11 // pred_fallthru
        _
      // Predicated region
      $region25: #{tpu_custom_call.1} parent=11 // pred_check
        %p198 = pneg %p148
      $region26: #{tpu_custom_call.1} parent=11 // pred_check_branch
        %200 = sbr.rel (%p198) target = $region28
      $region27: #{tpu_custom_call.1} parent=11 // pred_region
        _
      $region28: #{tpu_custom_call.1} parent=11 // pred_fallthru
        _
    $region12: #{tpu_custom_call.1} parent=5 // pred_fallthru
      _
    %p201 = scmp.lt.s32.totalorder %s12, 2
    // Predicated region
    $region29: #{tpu_custom_call.1} parent=5 // pred_check
      %p202 = pneg %p201
    $region30: #{tpu_custom_call.1} parent=5 // pred_check_branch
      %204 = sbr.rel (%p202) target = $region32
    $region31: #{tpu_custom_call.1} parent=5 // pred_region
      // Predicated region
      $region33: #{tpu_custom_call.1} parent=31 // pred_check
        %p205 = pneg %p32
      $region34: #{tpu_custom_call.1} parent=31 // pred_check_branch
        %207 = sbr.rel (%p205) target = $region36
      $region35: #{tpu_custom_call.1} parent=31 // pred_region
        %s208 = smul.u32 4, %s12
        %p209 = scmp.lt.s32.totalorder %s208, 7
        %s210 = scalar_select %p209, %s208, 7
        %s211 = smul.addr %s210, 8
        %s212 = scalar_lea.vmem %s0, %s211
        %s213 = smul.u32 4, %s12
      $region36: #{tpu_custom_call.1} parent=31 // pred_fallthru
        _
      // Predicated region
      $region37: #{tpu_custom_call.1} parent=31 // pred_check
        %p214 = pneg %p58
      $region38: #{tpu_custom_call.1} parent=31 // pred_check_branch
        %216 = sbr.rel (%p214) target = $region40
      $region39: #{tpu_custom_call.1} parent=31 // pred_region
        %s217 = smul.u32 4, %s12
        %p218 = scmp.lt.s32.totalorder %s217, 7
        %s219 = scalar_select %p218, %s217, 7
        %s220 = smul.addr %s219, 8
        %s221 = scalar_lea.vmem %s1, %s220
        %s222 = smul.u32 4, %s12
      $region40: #{tpu_custom_call.1} parent=31 // pred_fallthru
        _
    $region32: #{tpu_custom_call.1} parent=5 // pred_fallthru
      _
    %p223 = scmp.le.s32.totalorder 1, %s12
    %p224 = scmp.lt.s32.totalorder %s12, 3
    %p225 = pnand %p223, %p224
    %p226 = pneg %p225
    // Predicated region
    $region41: #{tpu_custom_call.1} parent=5 // pred_check
      _
    $region42: #{tpu_custom_call.1} parent=5 // pred_check_branch
      %228 = sbr.rel (%p225) target = $region44
    $region43: #{tpu_custom_call.1} parent=5 // pred_region
      %s229 = ssub.s32 %s12, 1
      %s230 = smul.u32 4, %s17
      %p231 = scmp.lt.s32.totalorder %s230, 7
      %s232 = scalar_select %p231, %s230, 7
      %s233 = smul.addr %s232, 8
      %s234 = scalar_lea.vmem %s0, %s233
      %p235 = pneg %p38
      %p236 = pneg %p35
      %s237 = smul.u32 4, %s17
      %p238 = scmp.lt.s32.totalorder %s237, 7
      %s239 = scalar_select %p238, %s237, 7
      %s240 = smul.addr %s239, 8
      %s241 = scalar_lea.vmem %s1, %s240
      %p242 = pneg %p64
      %p243 = pneg %p61
      %p244 = pneg %p85
      %p245 = pneg %p82
      %p246 = pneg %p106
      %p247 = pneg %p103
      %p248 = pneg %p127
      %p249 = pneg %p124
      %p250 = pneg %p148
      %p251 = pneg %p145
      %p252 = pneg %p174
      %p253 = pneg %p171
      %s254 = smul.u32 4, %s17
      %p255 = scmp.lt.s32.totalorder %s254, 7
      %s256 = scalar_select %p255, %s254, 7
      %s257 = smul.addr %s256, 8
      %s258 = scalar_lea.vmem %s6, %s257
      %s259 = smul.u32 4, %s17
      %p260 = scmp.lt.s32.totalorder %s259, 7
      %s261 = scalar_select %p260, %s259, 7
      %s262 = smul.addr %s261, 8
      %s263 = scalar_lea.vmem %s0, %s262
      %s264 = smul.u32 4, %s17
      %s265 = smul.u32 4, %s17
      %p266 = scmp.lt.s32.totalorder %s265, 7
      %s267 = scalar_select %p266, %s265, 7
      %s268 = smul.addr %s267, 8
      %s269 = scalar_lea.vmem %s1, %s268
      %s270 = smul.u32 4, %s17
      %s271 = smul.u32 4, %s17
      %p272 = scmp.lt.s32.totalorder %s271, 7
      %s273 = scalar_select %p272, %s271, 7
      %s274 = smul.addr %s273, 8
      %s275 = scalar_lea.vmem %s6, %s274
      %s276 = smul.u32 4, %s17
      %v277 = vld [vmem:[%s263] sm:$0xff]
      %v278 = vld [vmem:[%s263 + $0x8] sm:$0xff]
      %v279 = vld [vmem:[%s263 + $0x10] sm:$0xff]
      %v280 = vld [vmem:[%s263 + $0x18] sm:$0xff]
      %v281 = vmax.f32 %v277, -5.0
      %v282 = vmax.f32 %v278, -5.0
      %v283 = vmax.f32 %v279, -5.0
      %v284 = vmax.f32 %v280, -5.0
      %v285 = vmin.f32 %v281, 5.0
      %v286 = vmin.f32 %v282, 5.0
      %v287 = vmin.f32 %v283, 5.0
      %v288 = vmin.f32 %v284, 5.0
      %v289 = vld [vmem:[%s269] sm:$0xff]
      %v290 = vld [vmem:[%s269 + $0x8] sm:$0xff]
      %v291 = vld [vmem:[%s269 + $0x10] sm:$0xff]
      %v292 = vld [vmem:[%s269 + $0x18] sm:$0xff]
      %v293 = vld [vmem:[%s5] sm:$0x1]
      %v294 = vld [vmem:[%s5 + $0x1] sm:$0x1]
      %v295 = vld [vmem:[%s5 + $0x2] sm:$0x1]
      %v296 = vld [vmem:[%s5 + $0x3] sm:$0x1]
      %v297 = vld [vmem:[%s2] sm:$0xff]
      %v298 = vld [vmem:[%s2 + $0x8] sm:$0xff]
      %v299 = vld [vmem:[%s3] sm:$0xff]
      %vm300 = vcmask 64512
      %v302 = vsel %vm300, %v289, 0
      %v305 = vsel %vm300, %v290, 0
      %v308 = vsel %vm300, %v291, 0
      %v311 = vsel %vm300, %v292, 0
      %313 = vmatprep.subr.mxu0 0.0
      %314 = vmatpush1.msra.mxu0 0.0
      %315 = vmatprep.subr.mxu0 0.0
      %316 = vmatpush1.msra.mxu0 0.0
      %317 = vmatprep.subr.mxu0 0.0
      %318 = vmatpush1.msra.mxu0 0.0
      %319 = vmatprep.subr.mxu0 0.0
      %320 = vmatpush1.msra.mxu0 0.0
      %321 = vmatprep.subr.mxu0 0.0
      %322 = vmatpush1.msra.mxu0 0.0
      %323 = vmatprep.subr.mxu0 0.0
      %324 = vmatpush1.msra.mxu0 0.0
      %325 = vmatprep.subr.mxu0 0.0
      %326 = vmatpush1.msra.mxu0 0.0
      %327 = vmatprep.subr.mxu0 0.0
      %328 = vmatpush1.msra.mxu0 0.0
      %329 = vmatprep.subr.mxu0 0.0
      %330 = vmatpush1.msra.mxu0 0.0
      %331 = vmatprep.subr.mxu0 0.0
      %332 = vmatpush1.msra.mxu0 0.0
      %333 = vmatprep.subr.mxu0 0.0
      %334 = vmatpush1.msra.mxu0 0.0
      %335 = vmatprep.subr.mxu0 0.0
      %336 = vmatpush1.msra.mxu0 0.0
      %337 = vmatprep.subr.mxu0 0.0
      %338 = vmatpush1.msra.mxu0 0.0
      %339 = vmatprep.subr.mxu0 0.0
      %340 = vmatpush1.msra.mxu0 0.0
      %341 = vmatprep.subr.mxu0 0.0
      %342 = vmatpush1.msra.mxu0 0.0
      %343 = vmatprep.subr.mxu0 0.0
      %344 = vmatpush1.msra.mxu0 %v299
      %345 = vmatprep.subr.mxu0 0.0
      %346 = vmatpush2.msra.mxu0 0.0
      %347 = vmatprep.subr.mxu0 0.0
      %348 = vmatpush2.msra.mxu0 0.0
      %349 = vmatprep.subr.mxu0 0.0
      %350 = vmatpush2.msra.mxu0 0.0
      %351 = vmatprep.subr.mxu0 0.0
      %352 = vmatpush2.msra.mxu0 0.0
      %353 = vmatprep.subr.mxu0 0.0
      %354 = vmatpush2.msra.mxu0 0.0
      %355 = vmatprep.subr.mxu0 0.0
      %356 = vmatpush2.msra.mxu0 0.0
      %357 = vmatprep.subr.mxu0 0.0
      %358 = vmatpush2.msra.mxu0 0.0
      %359 = vmatprep.subr.mxu0 0.0
      %360 = vmatpush2.msra.mxu0 0.0
      %361 = vmatprep.subr.mxu0 0.0
      %362 = vmatpush2.msra.mxu0 0.0
      %363 = vmatprep.subr.mxu0 0.0
      %364 = vmatpush2.msra.mxu0 0.0
      %365 = vmatprep.subr.mxu0 0.0
      %366 = vmatpush2.msra.mxu0 0.0
      %367 = vmatprep.subr.mxu0 0.0
      %368 = vmatpush2.msra.mxu0 0.0
      %369 = vmatprep.subr.mxu0 0.0
      %370 = vmatpush2.msra.mxu0 0.0
      %371 = vmatprep.subr.mxu0 0.0
      %372 = vmatpush2.msra.mxu0 0.0
      %373 = vmatprep.subr.mxu0 0.0
      %374 = vmatpush2.msra.mxu0 0.0
      %375 = vmatprep.subr.mxu0 0.0
      %376 = vmatpush2.msra.mxu0 0.0
      %377 = vmatprep.mubr.f32.mxu0 0.0
      %378 = vmatmul.mubr.f32.gmra.mxu0 %v302
      %v379 = vpop.f32.mrf.mxu0
      %v380 = vadd.f32 0.0, %v379
      %v381 = vpop.f32.mrf.mxu0
      %382 = vmatprep.mubr.f32.mxu0 0.0
      %383 = vmatmul.mubr.f32.gmra.mxu0 %v305
      %v384 = vpop.f32.mrf.mxu0
      %v385 = vadd.f32 0.0, %v384
      %v386 = vpop.f32.mrf.mxu0
      %387 = vmatprep.mubr.f32.mxu0 0.0
      %388 = vmatmul.mubr.f32.gmra.mxu0 %v308
      %v389 = vpop.f32.mrf.mxu0
      %v390 = vadd.f32 0.0, %v389
      %v391 = vpop.f32.mrf.mxu0
      %392 = vmatprep.mubr.f32.mxu0 0.0
      %393 = vmatmul.mubr.f32.gmra.mxu0 %v311
      %v394 = vpop.f32.mrf.mxu0
      %v395 = vadd.f32 0.0, %v394
      %v396 = vpop.f32.mrf.mxu0
      %397 = vdwg.mxu0
      %vm398 = vcmask 130048
      %v400 = vsel %vm398, %v285, 0
      %v403 = vsel %vm398, %v286, 0
      %v406 = vsel %vm398, %v287, 0
      %v409 = vsel %vm398, %v288, 0
      %411 = vmatprep.subr.mxu0 0.0
      %412 = vmatpush1.msra.mxu0 0.0
      %413 = vmatprep.subr.mxu0 0.0
      %414 = vmatpush1.msra.mxu0 0.0
      %415 = vmatprep.subr.mxu0 0.0
      %416 = vmatpush1.msra.mxu0 0.0
      %417 = vmatprep.subr.mxu0 0.0
      %418 = vmatpush1.msra.mxu0 0.0
      %419 = vmatprep.subr.mxu0 0.0
      %420 = vmatpush1.msra.mxu0 0.0
      %421 = vmatprep.subr.mxu0 0.0
      %422 = vmatpush1.msra.mxu0 0.0
      %423 = vmatprep.subr.mxu0 0.0
      %424 = vmatpush1.msra.mxu0 0.0
      %425 = vmatprep.subr.mxu0 0.0
      %426 = vmatpush1.msra.mxu0 0.0
      %427 = vmatprep.subr.mxu0 0.0
      %428 = vmatpush1.msra.mxu0 0.0
      %429 = vmatprep.subr.mxu0 0.0
      %430 = vmatpush1.msra.mxu0 0.0
      %431 = vmatprep.subr.mxu0 0.0
      %432 = vmatpush1.msra.mxu0 0.0
      %433 = vmatprep.subr.mxu0 0.0
      %434 = vmatpush1.msra.mxu0 0.0
      %435 = vmatprep.subr.mxu0 0.0
      %436 = vmatpush1.msra.mxu0 0.0
      %437 = vmatprep.subr.mxu0 0.0
      %438 = vmatpush1.msra.mxu0 0.0
      %439 = vmatprep.subr.mxu0 0.0
      %440 = vmatpush1.msra.mxu0 %v298
      %441 = vmatprep.subr.mxu0 0.0
      %442 = vmatpush1.msra.mxu0 %v297
      %443 = vmatprep.subr.mxu0 0.0
      %444 = vmatpush2.msra.mxu0 0.0
      %445 = vmatprep.subr.mxu0 0.0
      %446 = vmatpush2.msra.mxu0 0.0
      %447 = vmatprep.subr.mxu0 0.0
      %448 = vmatpush2.msra.mxu0 0.0
      %449 = vmatprep.subr.mxu0 0.0
      %450 = vmatpush2.msra.mxu0 0.0
      %451 = vmatprep.subr.mxu0 0.0
      %452 = vmatpush2.msra.mxu0 0.0
      %453 = vmatprep.subr.mxu0 0.0
      %454 = vmatpush2.msra.mxu0 0.0
      %455 = vmatprep.subr.mxu0 0.0
      %456 = vmatpush2.msra.mxu0 0.0
      %457 = vmatprep.subr.mxu0 0.0
      %458 = vmatpush2.msra.mxu0 0.0
      %459 = vmatprep.subr.mxu0 0.0
      %460 = vmatpush2.msra.mxu0 0.0
      %461 = vmatprep.subr.mxu0 0.0
      %462 = vmatpush2.msra.mxu0 0.0
      %463 = vmatprep.subr.mxu0 0.0
      %464 = vmatpush2.msra.mxu0 0.0
      %465 = vmatprep.subr.mxu0 0.0
      %466 = vmatpush2.msra.mxu0 0.0
      %467 = vmatprep.subr.mxu0 0.0
      %468 = vmatpush2.msra.mxu0 0.0
      %469 = vmatprep.subr.mxu0 0.0
      %470 = vmatpush2.msra.mxu0 0.0
      %471 = vmatprep.subr.mxu0 0.0
      %472 = vmatpush2.msra.mxu0 0.0
      %473 = vmatprep.subr.mxu0 0.0
      %474 = vmatpush2.msra.mxu0 0.0
      %475 = vmatprep.mubr.f32.mxu0 0.0
      %476 = vmatmul.mubr.f32.gmra.mxu0 %v400
      %v477 = vpop.f32.mrf.mxu0
      %v478 = vadd.f32 %v380, %v477
      %v479 = vpop.f32.mrf.mxu0
      %480 = vmatprep.mubr.f32.mxu0 0.0
      %481 = vmatmul.mubr.f32.gmra.mxu0 %v403
      %v482 = vpop.f32.mrf.mxu0
      %v483 = vadd.f32 %v385, %v482
      %v484 = vpop.f32.mrf.mxu0
      %485 = vmatprep.mubr.f32.mxu0 0.0
      %486 = vmatmul.mubr.f32.gmra.mxu0 %v406
      %v487 = vpop.f32.mrf.mxu0
      %v488 = vadd.f32 %v390, %v487
      %v489 = vpop.f32.mrf.mxu0
      %490 = vmatprep.mubr.f32.mxu0 0.0
      %491 = vmatmul.mubr.f32.gmra.mxu0 %v409
      %v492 = vpop.f32.mrf.mxu0
      %v493 = vadd.f32 %v395, %v492
      %v494 = vpop.f32.mrf.mxu0
      %495 = vdwg.mxu0
      %v496 = vlaneseq
      %v497 = vshrl.u32 %v496, 7
      %v498 = vsub.s32 0, %v497
      %v499 = vrot.slane %v293, %v498
      %v500 = vadd.f32 %v478, %v499
      %v501 = vadd.f32 %v483, %v499
      %v502 = vadd.f32 %v488, %v499
      %v503 = vadd.f32 %v493, %v499
      %vm504 = vcmp.ge.f32.partialorder %v500, 0.0
      %vm505 = vcmp.ge.f32.partialorder %v501, 0.0
      %vm506 = vcmp.ge.f32.partialorder %v502, 0.0
      %vm507 = vcmp.ge.f32.partialorder %v503, 0.0
      %v508 = vmul.f32 %v500, 0.1
      %v509 = vmul.f32 %v501, 0.1
      %v510 = vmul.f32 %v502, 0.1
      %v511 = vmul.f32 %v503, 0.1
      %v512 = vsel %vm504, %v500, %v508
      %v513 = vsel %vm505, %v501, %v509
      %v514 = vsel %vm506, %v502, %v510
      %v515 = vsel %vm507, %v503, %v511
      %v516 = vld [vmem:[%s4] sm:$0xff]
      %v517 = vld [vmem:[%s4 + $0x8] sm:$0xff]
      %v518 = vld [vmem:[%s4 + $0x10] sm:$0xff]
      %v519 = vld [vmem:[%s4 + $0x18] sm:$0xff]
      %v520 = vld [vmem:[%s4 + $0x20] sm:$0xff]
      %v521 = vld [vmem:[%s4 + $0x28] sm:$0xff]
      %v522 = vld [vmem:[%s4 + $0x30] sm:$0xff]
      %v523 = vld [vmem:[%s4 + $0x38] sm:$0xff]
      %v524 = vld [vmem:[%s4 + $0x40] sm:$0xff]
      %v525 = vld [vmem:[%s4 + $0x48] sm:$0xff]
      %v526 = vld [vmem:[%s4 + $0x50] sm:$0xff]
      %v527 = vld [vmem:[%s4 + $0x58] sm:$0xff]
      %v528 = vld [vmem:[%s4 + $0x60] sm:$0xff]
      %v529 = vld [vmem:[%s4 + $0x68] sm:$0xff]
      %v530 = vld [vmem:[%s4 + $0x70] sm:$0xff]
      %v531 = vld [vmem:[%s4 + $0x78] sm:$0xff]
      %v532 = vlaneseq
      %v533 = vshrl.u32 %v532, 7
      %v534 = vsub.s32 0, %v533
      %v535 = vrot.slane %v294, %v534
      %536 = vmatprep.subr.mxu0 0.0
      %537 = vmatpush1.msra.mxu0 %v531
      %538 = vmatprep.subr.mxu0 0.0
      %539 = vmatpush1.msra.mxu0 %v530
      %540 = vmatprep.subr.mxu0 0.0
      %541 = vmatpush1.msra.mxu0 %v529
      %542 = vmatprep.subr.mxu0 0.0
      %543 = vmatpush1.msra.mxu0 %v528
      %544 = vmatprep.subr.mxu0 0.0
      %545 = vmatpush1.msra.mxu0 %v527
      %546 = vmatprep.subr.mxu0 0.0
      %547 = vmatpush1.msra.mxu0 %v526
      %548 = vmatprep.subr.mxu0 0.0
      %549 = vmatpush1.msra.mxu0 %v525
      %550 = vmatprep.subr.mxu0 0.0
      %551 = vmatpush1.msra.mxu0 %v524
      %552 = vmatprep.subr.mxu0 0.0
      %553 = vmatpush1.msra.mxu0 %v523
      %554 = vmatprep.subr.mxu0 0.0
      %555 = vmatpush1.msra.mxu0 %v522
      %556 = vmatprep.subr.mxu0 0.0
      %557 = vmatpush1.msra.mxu0 %v521
      %558 = vmatprep.subr.mxu0 0.0
      %559 = vmatpush1.msra.mxu0 %v520
      %560 = vmatprep.subr.mxu0 0.0
      %561 = vmatpush1.msra.mxu0 %v519
      %562 = vmatprep.subr.mxu0 0.0
      %563 = vmatpush1.msra.mxu0 %v518
      %564 = vmatprep.subr.mxu0 0.0
      %565 = vmatpush1.msra.mxu0 %v517
      %566 = vmatprep.subr.mxu0 0.0
      %567 = vmatpush1.msra.mxu0 %v516
      %568 = vmatprep.subr.mxu0 0.0
      %569 = vmatpush2.msra.mxu0 0.0
      %570 = vmatprep.subr.mxu0 0.0
      %571 = vmatpush2.msra.mxu0 0.0
      %572 = vmatprep.subr.mxu0 0.0
      %573 = vmatpush2.msra.mxu0 0.0
      %574 = vmatprep.subr.mxu0 0.0
      %575 = vmatpush2.msra.mxu0 0.0
      %576 = vmatprep.subr.mxu0 0.0
      %577 = vmatpush2.msra.mxu0 0.0
      %578 = vmatprep.subr.mxu0 0.0
      %579 = vmatpush2.msra.mxu0 0.0
      %580 = vmatprep.subr.mxu0 0.0
      %581 = vmatpush2.msra.mxu0 0.0
      %582 = vmatprep.subr.mxu0 0.0
      %583 = vmatpush2.msra.mxu0 0.0
      %584 = vmatprep.subr.mxu0 0.0
      %585 = vmatpush2.msra.mxu0 0.0
      %586 = vmatprep.subr.mxu0 0.0
      %587 = vmatpush2.msra.mxu0 0.0
      %588 = vmatprep.subr.mxu0 0.0
      %589 = vmatpush2.msra.mxu0 0.0
      %590 = vmatprep.subr.mxu0 0.0
      %591 = vmatpush2.msra.mxu0 0.0
      %592 = vmatprep.subr.mxu0 0.0
      %593 = vmatpush2.msra.mxu0 0.0
      %594 = vmatprep.subr.mxu0 0.0
      %595 = vmatpush2.msra.mxu0 0.0
      %596 = vmatprep.subr.mxu0 0.0
      %597 = vmatpush2.msra.mxu0 0.0
      %598 = vmatprep.subr.mxu0 0.0
      %599 = vmatpush2.msra.mxu0 0.0
      %600 = vmatprep.mubr.f32.mxu0 0.0
      %601 = vmatmul.mubr.f32.gmra.mxu0 %v512
      %v602 = vpop.f32.mrf.mxu0
      %v603 = vadd.f32 %v535, %v602
      %v604 = vpop.f32.mrf.mxu0
      %605 = vmatprep.mubr.f32.mxu0 0.0
      %606 = vmatmul.mubr.f32.gmra.mxu0 %v513
      %v607 = vpop.f32.mrf.mxu0
      %v608 = vadd.f32 %v535, %v607
      %v609 = vpop.f32.mrf.mxu0
      %610 = vmatprep.mubr.f32.mxu0 0.0
      %611 = vmatmul.mubr.f32.gmra.mxu0 %v514
      %v612 = vpop.f32.mrf.mxu0
      %v613 = vadd.f32 %v535, %v612
      %v614 = vpop.f32.mrf.mxu0
      %615 = vmatprep.mubr.f32.mxu0 0.0
      %616 = vmatmul.mubr.f32.gmra.mxu0 %v515
      %v617 = vpop.f32.mrf.mxu0
      %v618 = vadd.f32 %v535, %v617
      %v619 = vpop.f32.mrf.mxu0
      %620 = vdwg.mxu0
      %vm621 = vcmp.ge.f32.partialorder %v603, 0.0
      %vm622 = vcmp.ge.f32.partialorder %v608, 0.0
      %vm623 = vcmp.ge.f32.partialorder %v613, 0.0
      %vm624 = vcmp.ge.f32.partialorder %v618, 0.0
      %v625 = vmul.f32 %v603, 0.1
      %v626 = vmul.f32 %v608, 0.1
      %v627 = vmul.f32 %v613, 0.1
      %v628 = vmul.f32 %v618, 0.1
      %v629 = vsel %vm621, %v603, %v625
      %v630 = vsel %vm622, %v608, %v626
      %v631 = vsel %vm623, %v613, %v627
      %v632 = vsel %vm624, %v618, %v628
      %v633 = vlaneseq
      %v634 = vshrl.u32 %v633, 7
      %v635 = vsub.s32 0, %v634
      %v636 = vrot.slane %v295, %v635
      %v637 = vmul.f32 %v629, %v636
      %v638 = vmul.f32 %v630, %v636
      %v639 = vmul.f32 %v631, %v636
      %v640 = vmul.f32 %v632, %v636
      %641 = vadd.xlane.f32.xlu0 %v637
      %v642 = vpop.xlane.xlu0 %641
      %643 = vadd.xlane.f32.xlu0 %v638
      %v644 = vpop.xlane.xlu0 %643
      %645 = vadd.xlane.f32.xlu0 %v639
      %v646 = vpop.xlane.xlu0 %645
      %647 = vadd.xlane.f32.xlu0 %v640
      %v648 = vpop.xlane.xlu0 %647
      %v649 = vlaneseq
      %v650 = vshrl.u32 %v649, 7
      %v651 = vsub.s32 0, %v650
      %v652 = vrot.slane %v296, %v651
      %v653 = vadd.f32 %v642, %v652
      %v654 = vadd.f32 %v644, %v652
      %v655 = vadd.f32 %v646, %v652
      %v656 = vadd.f32 %v648, %v652
      %vm657 = vcmask 7168
      %658 = vst.msk [vmem:[%s275] sm:$0xff] %vm657, %v653
      %659 = vst.msk [vmem:[%s275 + $0x8] sm:$0xff] %vm657, %v654
      %660 = vst.msk [vmem:[%s275 + $0x10] sm:$0xff] %vm657, %v655
      %661 = vst.msk [vmem:[%s275 + $0x18] sm:$0xff] %vm657, %v656
      %s662 = smul.u32 4, %s17
      %p663 = scmp.lt.s32.totalorder %s662, 7
      %s664 = scalar_select %p663, %s662, 7
      %s665 = smul.addr %s664, 8
      %s666 = scalar_lea.vmem %s6, %s665
      // Predicated region
      $region45: #{tpu_custom_call.1} parent=43 // pred_check
        %p667 = pneg %p171
      $region46: #{tpu_custom_call.1} parent=43 // pred_check_branch
        %669 = sbr.rel (%p667) target = $region48
      $region47: #{tpu_custom_call.1} parent=43 // pred_region
        %s670 = smul.u32 4, %s17
      $region48: #{tpu_custom_call.1} parent=43 // pred_fallthru
        _
    $region44: #{tpu_custom_call.1} parent=5 // pred_fallthru
      _
    %p671 = scmp.le.s32.totalorder 2, %s12
    // Predicated region
    $region49: #{tpu_custom_call.1} parent=5 // pred_check
      %p672 = pneg %p671
    $region50: #{tpu_custom_call.1} parent=5 // pred_check_branch
      %674 = sbr.rel (%p672) target = $region52
    $region51: #{tpu_custom_call.1} parent=5 // pred_region
      %s675 = ssub.s32 %s12, 2
      // Predicated region
      $region53: #{tpu_custom_call.1} parent=51 // pred_check
        %p676 = pneg %p177
      $region54: #{tpu_custom_call.1} parent=51 // pred_check_branch
        %678 = sbr.rel (%p676) target = $region56
      $region55: #{tpu_custom_call.1} parent=51 // pred_region
        %s679 = smul.u32 4, %s18
        %p680 = scmp.lt.s32.totalorder %s679, 7
        %s681 = scalar_select %p680, %s679, 7
        %s682 = smul.addr %s681, 8
        %s683 = scalar_lea.vmem %s6, %s682
      $region56: #{tpu_custom_call.1} parent=51 // pred_fallthru
        _
    $region52: #{tpu_custom_call.1} parent=5 // pred_fallthru
      _
  $region6: #{tpu_custom_call.1} parent=0 // loop_footer
    %s16 = sadd.s32 1, %s12
  $region7: #{tpu_custom_call.1} parent=0 // loop_footer_branch
    %11 = sbr.rel target = $region3
  $region8: #{tpu_custom_call.1} parent=0 // loop_exit
    _

</llo_original>
